<compile_context>
chip_gen: v5e
topology: v5e:2x2
jax: 0.10.0
libtpu: 0.0.40
codegen_flags: <defaults>
</compile_context>

<pallas_src>
import jax
import jax.numpy as jnp
from jax import lax
from jax.experimental import pallas as pl
from jax.experimental.pallas import tpu as pltpu

_LANES = 128
_MAX_BLOCK_ROWS = 1024  # sublane rows per block (multiple of 32 -> ok for f32/bf16/int8)


def _sublane_multiple(dtype) -> int:
    """Sublane tiling granularity: (8,128) f32, (16,128) bf16, (32,128) int8."""
    return max(8, 32 // jnp.dtype(dtype).itemsize)


def _make_sums_kernel(block_rows: int, rows: int, inner: int):
    """Kernel computing per-chunk (8,128) partials of sum(d^2) and sum(|d|)."""
    tail = rows % block_rows  # static: >0 only if the last block overhangs the array

    def kernel(p_ref, g_ref, sq_out, ab_out, acc_sq, acc_ab):
        c = pl.program_id(0)  # parallel chunk axis
        k = pl.program_id(1)  # sequential reduction axis

        @pl.when(k == 0)
        def _init():
            acc_sq[...] = jnp.zeros_like(acc_sq)
            acc_ab[...] = jnp.zeros_like(acc_ab)

        p = p_ref[...]
        g = g_ref[...]
        if tail:
            # Ragged last block: zero out rows past the true array extent
            # (the DMA only fills the valid region; the rest is garbage).
            base = (c * inner + k) * block_rows
            row_id = lax.broadcasted_iota(jnp.int32, (block_rows, _LANES), 0)
            valid = (base + row_id) < rows
            p = jnp.where(valid, p, jnp.zeros_like(p))
            g = jnp.where(valid, g, jnp.zeros_like(g))

        d = p.astype(jnp.float32) - g.astype(jnp.float32)
        # Reduce the whole block to vreg-sized (8,128) partials in-step.
        acc_sq[...] += jnp.sum((d * d).reshape(-1, 8, _LANES), axis=0)
        acc_ab[...] += jnp.sum(jnp.abs(d).reshape(-1, 8, _LANES), axis=0)

        @pl.when(k == pl.num_programs(1) - 1)
        def _finalize():
            sq_out[...] = acc_sq[...]
            ab_out[...] = acc_ab[...]

    return kernel


def _pair_sums(pred: jax.Array, gt: jax.Array):
    """One fused streaming pass: (sum((p-g)^2), sum(|p-g|), n_elements)."""
    assert pred.shape == gt.shape, (pred.shape, gt.shape)
    n = pred.size
    p = pred.reshape(-1)  # native dtype; cast happens inside the kernel
    g = gt.reshape(-1)

    sub = max(_sublane_multiple(p.dtype), _sublane_multiple(g.dtype))
    tile_elems = sub * _LANES
    n_pad = ((n + tile_elems - 1) // tile_elems) * tile_elems
    if n_pad != n:
        # Pads at most one (sub,128) tile so the flat array reshapes to
        # (rows, 128); a no-op for aligned NCHW sizes.  Zeros add nothing to
        # either sum and the mean divides by the true n.
        p = jnp.pad(p, (0, n_pad - n))
        g = jnp.pad(g, (0, n_pad - n))
    rows = n_pad // _LANES
    p2 = p.reshape(rows, _LANES)
    g2 = g.reshape(rows, _LANES)

    block_rows = min(_MAX_BLOCK_ROWS, rows)
    total_blocks = (rows + block_rows - 1) // block_rows
    # Outer "parallel" axis: lets v7x's 2 TensorCores each take half the blocks
    # (harmless no-op on single-TC v5e/v6e).
    n_chunks = 2 if (total_blocks >= 2 and total_blocks % 2 == 0) else 1
    inner = total_blocks // n_chunks

    kernel = _make_sums_kernel(block_rows, rows, inner)
    sq_p, ab_p = pl.pallas_call(
        kernel,
        out_shape=(
            jax.ShapeDtypeStruct((n_chunks * 8, _LANES), jnp.float32),
            jax.ShapeDtypeStruct((n_chunks * 8, _LANES), jnp.float32),
        ),
        grid_spec=pltpu.PrefetchScalarGridSpec(
            num_scalar_prefetch=0,
            grid=(n_chunks, inner),
            in_specs=[
                pl.BlockSpec((block_rows, _LANES), lambda c, k: (c * inner + k, 0)),
                pl.BlockSpec((block_rows, _LANES), lambda c, k: (c * inner + k, 0)),
            ],
            out_specs=[
                pl.BlockSpec((8, _LANES), lambda c, k: (c, 0)),
                pl.BlockSpec((8, _LANES), lambda c, k: (c, 0)),
            ],
            scratch_shapes=[
                pltpu.VMEM((8, _LANES), jnp.float32),
                pltpu.VMEM((8, _LANES), jnp.float32),
            ],
        ),
        compiler_params=pltpu.CompilerParams(
            dimension_semantics=("parallel", "arbitrary")),
    )(p2, g2)
    # Tiny wrapper-side reduction of the lane partials (a few KiB).
    return jnp.sum(sq_p), jnp.sum(ab_p), n


def _loss_from_sums(loss_name: str, sq, ab, n: int):
    if loss_name == "MSELoss":
        return sq / jnp.float32(n)
    if loss_name == "L1Loss":
        return ab / jnp.float32(n)
    raise KeyError(f"Unsupported loss: {loss_name}")


class MultiTaskLoss:
    """JAX/Pallas port of the PyTorch MultiTaskLoss module.

    task_losses maps task name -> list of loss names ("MSELoss", "L1Loss"),
    mirroring nn.MSELoss / nn.L1Loss (mean reduction) in the reference module.
    """

    # TODO(synk): for workloads with many tiny tasks, fuse all task pairs into
    # a single pallas_call (scalar-prefetched per-task block ranges) to
    # amortize launch/pipeline-warmup overhead across tasks.

    def __init__(self, task_losses: dict):
        self.task_losses = task_losses

    def __call__(self, pred: dict, gt: dict):
        total_loss = jnp.float32(0.0)
        per_task_losses = {task: {} for task in self.task_losses.keys()}
        tasks = set(gt.keys()).intersection(set(pred.keys()))
        for task in sorted(tasks):
            loss_names = self.task_losses.get(task, None)
            if loss_names:
                # One fused HBM pass per task pair: both reductions come out of
                # the same kernel launch and are reused for every configured loss.
                sq, ab, n = _pair_sums(pred[task], gt[task])
                for loss_name in loss_names:
                    val = _loss_from_sums(loss_name, sq, ab, n)
                    per_task_losses[task][loss_name] = val
                    total_loss = total_loss + val
        return total_loss, per_task_losses


if __name__ == "__main__":
    key = jax.random.PRNGKey(0)
    k1, k2, k3, k4, k5, k6, k7 = jax.random.split(key, 7)

    # NCHW predictions / ground truths.  "extra" is sized so its flattened
    # slab spans multiple (1024,128) blocks with a ragged tail, exercising the
    # parallel chunk axis and the in-kernel mask path.
    pred = {
        "depth": jax.random.normal(k1, (2, 1, 16, 16), dtype=jnp.float32),
        "normals": jax.random.normal(k2, (2, 3, 16, 16), dtype=jnp.float32),
        "extra": jax.random.normal(k3, (2, 4, 136, 136), dtype=jnp.float32),
        "pred_only": jax.random.normal(k7, (2, 4, 8, 8), dtype=jnp.float32),
    }
    gt = {
        "depth": jax.random.normal(k4, (2, 1, 16, 16), dtype=jnp.float32),
        "normals": jax.random.normal(k5, (2, 3, 16, 16), dtype=jnp.float32),
        "extra": jax.random.normal(k6, (2, 4, 136, 136), dtype=jnp.float32),
        # "pred_only" missing from gt -> skipped (set intersection), like PyTorch.
    }

    loss_module = MultiTaskLoss({
        "depth": ["MSELoss", "L1Loss"],
        "normals": ["MSELoss"],
        "extra": ["MSELoss", "L1Loss"],
        "pred_only": ["MSELoss"],
    })

    total, per_task = loss_module(pred, gt)
    total = jax.block_until_ready(total)

    # Pure-JAX reference.
    def mse(a, b):
        return jnp.mean((a - b) ** 2)

    def l1(a, b):
        return jnp.mean(jnp.abs(a - b))

    ref_total = (mse(pred["depth"], gt["depth"]) + l1(pred["depth"], gt["depth"])
                 + mse(pred["normals"], gt["normals"])
                 + mse(pred["extra"], gt["extra"]) + l1(pred["extra"], gt["extra"]))

    assert jnp.allclose(total, ref_total, rtol=1e-4, atol=1e-5), (total, ref_total)
    assert jnp.allclose(per_task["extra"]["MSELoss"], mse(pred["extra"], gt["extra"]),
                        rtol=1e-4, atol=1e-6)
    assert jnp.allclose(per_task["extra"]["L1Loss"], l1(pred["extra"], gt["extra"]),
                        rtol=1e-4, atol=1e-6)
    assert jnp.allclose(per_task["depth"]["L1Loss"], l1(pred["depth"], gt["depth"]),
                        rtol=1e-4, atol=1e-6)

    print("KERNEL_OK")
</pallas_src>

<mosaic_0001>
module attributes {stable_mosaic.version = 11 : i64} {
  func.func @kernel(%arg0: i32, %arg1: i32, %arg2: memref<8x128xf32, #tpu.memory_space<vmem>>, %arg3: memref<8x128xf32, #tpu.memory_space<vmem>>, %arg4: memref<8x128xf32, #tpu.memory_space<vmem>>, %arg5: memref<8x128xf32, #tpu.memory_space<vmem>>, %arg6: memref<8x128xf32, #tpu.memory_space<vmem>>, %arg7: memref<8x128xf32, #tpu.memory_space<vmem>>) attributes {dimension_semantics = [#tpu.dimension_semantics<parallel>, #tpu.dimension_semantics<arbitrary>], iteration_bounds = array<i64: 1, 1>, scalar_prefetch = 0 : i64, scratch_operands = 2 : i64, tpu.core_type = #tpu.core_type<tc>, window_params = [{transform_indices = @transform_0, window_bounds = array<i64: 8, 128>}, {transform_indices = @transform_1, window_bounds = array<i64: 8, 128>}, {transform_indices = @transform_2, window_bounds = array<i64: 8, 128>}, {transform_indices = @transform_3, window_bounds = array<i64: 8, 128>}]} {
    %c0_i32 = arith.constant 0 : i32
    %0 = arith.cmpi eq, %arg1, %c0_i32 : i32
    %1 = arith.extui %0 : i1 to i32
    %c0_i32_0 = arith.constant 0 : i32
    %2 = arith.cmpi ne, %1, %c0_i32_0 : i32
    scf.if %2 {
      %cst_15 = arith.constant 0.000000e+00 : f32
      %21 = vector.broadcast %cst_15 : f32 to vector<8x128xf32>
      %c0_16 = arith.constant 0 : index
      %c0_17 = arith.constant 0 : index
      %22 = vector.load %arg6[%c0_16, %c0_17] : memref<8x128xf32, #tpu.memory_space<vmem>>, vector<8x128xf32>
      tpu.vector_store %arg6[%c0_16, %c0_17], %21 {strides = array<i32>} : memref<8x128xf32, #tpu.memory_space<vmem>>, vector<8x128xf32>,
      %cst_18 = arith.constant 0.000000e+00 : f32
      %23 = vector.broadcast %cst_18 : f32 to vector<8x128xf32>
      %c0_19 = arith.constant 0 : index
      %c0_20 = arith.constant 0 : index
      %24 = vector.load %arg7[%c0_19, %c0_20] : memref<8x128xf32, #tpu.memory_space<vmem>>, vector<8x128xf32>
      tpu.vector_store %arg7[%c0_19, %c0_20], %23 {strides = array<i32>} : memref<8x128xf32, #tpu.memory_space<vmem>>, vector<8x128xf32>,
    } else {
    }
    %c0 = arith.constant 0 : index
    %c0_1 = arith.constant 0 : index
    %3 = vector.load %arg2[%c0, %c0_1] : memref<8x128xf32, #tpu.memory_space<vmem>>, vector<8x128xf32>
    %c0_2 = arith.constant 0 : index
    %c0_3 = arith.constant 0 : index
    %4 = vector.load %arg3[%c0_2, %c0_3] : memref<8x128xf32, #tpu.memory_space<vmem>>, vector<8x128xf32>
    %5 = arith.subf %3, %4 : vector<8x128xf32>
    %c0_4 = arith.constant 0 : index
    %c0_5 = arith.constant 0 : index
    %6 = vector.load %arg6[%c0_4, %c0_5] : memref<8x128xf32, #tpu.memory_space<vmem>>, vector<8x128xf32>
    %7 = arith.mulf %5, %5 : vector<8x128xf32>
    %8 = vector.shape_cast %7 : vector<8x128xf32> to vector<1x8x128xf32>
    %cst = arith.constant dense<0.000000e+00> : vector<8x128xf32>
    %9 = vector.multi_reduction <add>, %8, %cst [0] : vector<1x8x128xf32> to vector<8x128xf32>
    %10 = arith.addf %6, %9 : vector<8x128xf32>
    %c0_6 = arith.constant 0 : index
    %c0_7 = arith.constant 0 : index
    %11 = vector.load %arg6[%c0_6, %c0_7] : memref<8x128xf32, #tpu.memory_space<vmem>>, vector<8x128xf32>
    tpu.vector_store %arg6[%c0_6, %c0_7], %10 {strides = array<i32>} : memref<8x128xf32, #tpu.memory_space<vmem>>, vector<8x128xf32>,
    %c0_8 = arith.constant 0 : index
    %c0_9 = arith.constant 0 : index
    %12 = vector.load %arg7[%c0_8, %c0_9] : memref<8x128xf32, #tpu.memory_space<vmem>>, vector<8x128xf32>
    %13 = math.absf %5 : vector<8x128xf32>
    %14 = vector.shape_cast %13 : vector<8x128xf32> to vector<1x8x128xf32>
    %cst_10 = arith.constant dense<0.000000e+00> : vector<8x128xf32>
    %15 = vector.multi_reduction <add>, %14, %cst_10 [0] : vector<1x8x128xf32> to vector<8x128xf32>
    %16 = arith.addf %12, %15 : vector<8x128xf32>
    %c0_11 = arith.constant 0 : index
    %c0_12 = arith.constant 0 : index
    %17 = vector.load %arg7[%c0_11, %c0_12] : memref<8x128xf32, #tpu.memory_space<vmem>>, vector<8x128xf32>
    tpu.vector_store %arg7[%c0_11, %c0_12], %16 {strides = array<i32>} : memref<8x128xf32, #tpu.memory_space<vmem>>, vector<8x128xf32>,
    %c0_i32_13 = arith.constant 0 : i32
    %18 = arith.cmpi eq, %arg1, %c0_i32_13 : i32
    %19 = arith.extui %18 : i1 to i32
    %c0_i32_14 = arith.constant 0 : i32
    %20 = arith.cmpi ne, %19, %c0_i32_14 : i32
    scf.if %20 {
      %c0_15 = arith.constant 0 : index
      %c0_16 = arith.constant 0 : index
      %21 = vector.load %arg6[%c0_15, %c0_16] : memref<8x128xf32, #tpu.memory_space<vmem>>, vector<8x128xf32>
      %c0_17 = arith.constant 0 : index
      %c0_18 = arith.constant 0 : index
      %22 = vector.load %arg4[%c0_17, %c0_18] : memref<8x128xf32, #tpu.memory_space<vmem>>, vector<8x128xf32>
      tpu.vector_store %arg4[%c0_17, %c0_18], %21 {strides = array<i32>} : memref<8x128xf32, #tpu.memory_space<vmem>>, vector<8x128xf32>,
      %c0_19 = arith.constant 0 : index
      %c0_20 = arith.constant 0 : index
      %23 = vector.load %arg7[%c0_19, %c0_20] : memref<8x128xf32, #tpu.memory_space<vmem>>, vector<8x128xf32>
      %c0_21 = arith.constant 0 : index
      %c0_22 = arith.constant 0 : index
      %24 = vector.load %arg5[%c0_21, %c0_22] : memref<8x128xf32, #tpu.memory_space<vmem>>, vector<8x128xf32>
      tpu.vector_store %arg5[%c0_21, %c0_22], %23 {strides = array<i32>} : memref<8x128xf32, #tpu.memory_space<vmem>>, vector<8x128xf32>,
    } else {
    }
    return
  }
  func.func @transform_0(%arg0: i32, %arg1: i32) -> (i32, i32) {
    %c1_i32 = arith.constant 1 : i32
    %0 = arith.muli %arg0, %c1_i32 : i32
    %1 = arith.addi %0, %arg1 : i32
    %c0_i32 = arith.constant 0 : i32
    %c0_i32_0 = arith.constant 0 : i32
    return %1, %c0_i32 : i32, i32
  }
  func.func @transform_1(%arg0: i32, %arg1: i32) -> (i32, i32) {
    %c1_i32 = arith.constant 1 : i32
    %0 = arith.muli %arg0, %c1_i32 : i32
    %1 = arith.addi %0, %arg1 : i32
    %c0_i32 = arith.constant 0 : i32
    %c0_i32_0 = arith.constant 0 : i32
    return %1, %c0_i32 : i32, i32
  }
  func.func @transform_2(%arg0: i32, %arg1: i32) -> (i32, i32) {
    %c0_i32 = arith.constant 0 : i32
    %c0_i32_0 = arith.constant 0 : i32
    return %arg0, %c0_i32 : i32, i32
  }
  func.func @transform_3(%arg0: i32, %arg1: i32) -> (i32, i32) {
    %c0_i32 = arith.constant 0 : i32
    %c0_i32_0 = arith.constant 0 : i32
    return %arg0, %c0_i32 : i32, i32
  }
}

</mosaic_0001>

<llo_original>
// kernel: tpu_custom_call.1
$region0: #{tpu_custom_call.1}
  #allocation0 [shape = 'u32[]', space=smem, size = 0x4, offset = 0x4, fixed_abs, tag = 'smem constant byte address 0x4 - core index']
  #allocation1 [shape = 'u32[72,128]{1,0:T(1,128)}', space=vmem, size = 0x9000, scoped, tag = 'internal scratch']
  #allocation2 [shape = 'f32[8,128]{1,0:T(8,128)}', space=vmem, size = 0x1000, scoped, tag = 'scratch operand']
  #allocation3 [shape = 'f32[8,128]{1,0:T(8,128)}', space=vmem, size = 0x1000, scoped, tag = 'scratch operand']
  %s0 = inlined_call_operand.hbm [shape: f32[8,128], index: 0, kind: input, shape index: {}]
  %s1 = inlined_call_operand.hbm [shape: f32[8,128], index: 1, kind: input, shape index: {}]
  %s2 = inlined_call_operand.hbm [shape: f32[8,128], index: 2, kind: output, shape index: {0}]
  %s3 = inlined_call_operand.hbm [shape: f32[8,128], index: 3, kind: output, shape index: {1}]
  %4 = xla_tuple %s2, %s3
  %s5 = sld [smem:[#allocation0]]
  $region42: #{tpu_custom_call.1} parent=0
    _
  %s7 = ssub.s32 1, %s5
  %s8 = scalar_select 0, %s7, %s5
  $region1: #{tpu_custom_call.1} parent=0
    #allocation4 [shape = 'u8[4096]{0}', space=vmem, size = 0x1000, scoped, tag = 'input window, operand 0, single buffered']
    #allocation5 [shape = 's32[1]{0}', space=sflag, size = 0x4, scoped, tag = 'scoped memory for tpu_custom_call.1']
    #allocation6 [shape = 's32[1]{0}', space=sflag, size = 0x4, scoped, tag = 'scoped memory for tpu_custom_call.1']
    #allocation7 [shape = 'u8[4096]{0}', space=vmem, size = 0x1000, scoped, tag = 'input window, operand 1, single buffered']
    #allocation8 [shape = 's32[1]{0}', space=sflag, size = 0x4, scoped, tag = 'scoped memory for tpu_custom_call.1']
    #allocation9 [shape = 'u8[4096]{0}', space=vmem, size = 0x1000, scoped, tag = 'output window, operand 0, single buffered']
    #allocation10 [shape = 'u8[4096]{0}', space=vmem, size = 0x1000, scoped, tag = 'output window, operand 1, single buffered']
    #allocation11 [shape = 's32[1]{0}', space=sflag, size = 0x4, scoped, tag = 'scoped memory for tpu_custom_call.1']
    %9 = vsyncpa [#allocation5], 0
    %10 = vsyncpa [#allocation8], 0
    %11 = vsyncpa [#allocation6], 0
    %12 = vsyncpa [#allocation11], 0
    // Predicated region
    $region2: #{tpu_custom_call.1} parent=1 // pred_check
      _
    $region3: #{tpu_custom_call.1} parent=1 // pred_check_branch
      %14 = sbr.rel (0) target = $region5
    $region4: #{tpu_custom_call.1} parent=1 // pred_region
      %s15 = sadd.s32 0, 0
      %17 = vsyncadd [#allocation5], 0
      %s18 = smul.addr %s15, 8
      %s19 = scalar_lea.hbm %s0, %s18
      %s21 = sshll.u32 %s19, 4
      %s22 = int_to_ptr.hbm [resolvable:$true] %s21
      %s23 = sshll.u32 [#allocation4], 4
      %s24 = int_to_ptr.vmem [resolvable:$true] %s23
      %26 = dma.hbm_to_vmem [thread:$0]  %s22, 128, %s24, [#allocation5]
    $region5: #{tpu_custom_call.1} parent=1 // pred_fallthru
      _
    // Predicated region
    $region6: #{tpu_custom_call.1} parent=1 // pred_check
      _
    $region7: #{tpu_custom_call.1} parent=1 // pred_check_branch
      %28 = sbr.rel (0) target = $region9
    $region8: #{tpu_custom_call.1} parent=1 // pred_region
      %s29 = sadd.s32 0, 0
      %31 = vsyncadd [#allocation8], 0
      %s32 = smul.addr %s29, 8
      %s33 = scalar_lea.hbm %s1, %s32
      %s35 = sshll.u32 %s33, 4
      %s36 = int_to_ptr.hbm [resolvable:$true] %s35
      %s37 = sshll.u32 [#allocation7], 4
      %s38 = int_to_ptr.vmem [resolvable:$true] %s37
      %40 = dma.hbm_to_vmem [thread:$0]  %s36, 128, %s38, [#allocation8]
    $region9: #{tpu_custom_call.1} parent=1 // pred_fallthru
      _
    // Predicated region
    $region10: #{tpu_custom_call.1} parent=1 // pred_check
      _
    $region11: #{tpu_custom_call.1} parent=1 // pred_check_branch
      %42 = sbr.rel (0) target = $region13
    $region12: #{tpu_custom_call.1} parent=1 // pred_region
      %44 = dma.done [#allocation5], 128
    $region13: #{tpu_custom_call.1} parent=1 // pred_fallthru
      _
    // Predicated region
    $region14: #{tpu_custom_call.1} parent=1 // pred_check
      _
    $region15: #{tpu_custom_call.1} parent=1 // pred_check_branch
      %46 = sbr.rel (0) target = $region17
    $region16: #{tpu_custom_call.1} parent=1 // pred_region
      %48 = dma.done [#allocation8], 128
    $region17: #{tpu_custom_call.1} parent=1 // pred_fallthru
      _
    %s49 = sadd.s32 0, 0
    %s50 = sadd.s32 0, 0
    %p51 = scmp.eq.s32.totalorder 0, 0
    // Predicated region
    $region18: #{tpu_custom_call.1} parent=1 // pred_check
      %p52 = pneg %p51
    $region19: #{tpu_custom_call.1} parent=1 // pred_check_branch
      %54 = sbr.rel (%p52) target = $region21
    $region20: #{tpu_custom_call.1} parent=1 // pred_region
      %55 = vst [vmem:[#allocation2] sm:$0xff] 0.0
      %56 = vst [vmem:[#allocation3] sm:$0xff] 0.0
    $region21: #{tpu_custom_call.1} parent=1 // pred_fallthru
      _
    %v57 = vld [vmem:[#allocation4] sm:$0xff]
    %v58 = vld [vmem:[#allocation7] sm:$0xff]
    %v59 = vsub.f32 %v57, %v58
    %v60 = vld [vmem:[#allocation2] sm:$0xff]
    %v61 = vmul.f32 %v59, %v59
    %v62 = vadd.f32 %v61, 0.0
    %v63 = vadd.f32 %v60, %v62
    %64 = vst [vmem:[#allocation2] sm:$0xff] %v63
    %v65 = vld [vmem:[#allocation3] sm:$0xff]
    %v66 = vand.u32 2147483647, %v59
    %v67 = vadd.f32 %v66, 0.0
    %v68 = vadd.f32 %v65, %v67
    %69 = vst [vmem:[#allocation3] sm:$0xff] %v68
    // Predicated region
    $region22: #{tpu_custom_call.1} parent=1 // pred_check
      %p70 = pneg %p51
    $region23: #{tpu_custom_call.1} parent=1 // pred_check_branch
      %72 = sbr.rel (%p70) target = $region25
    $region24: #{tpu_custom_call.1} parent=1 // pred_region
      %v73 = vld [vmem:[#allocation2] sm:$0xff]
      %74 = vst [vmem:[#allocation9] sm:$0xff] %v73
      %v75 = vld [vmem:[#allocation3] sm:$0xff]
      %76 = vst [vmem:[#allocation10] sm:$0xff] %v75
    $region25: #{tpu_custom_call.1} parent=1 // pred_fallthru
      _
    // Predicated region
    $region26: #{tpu_custom_call.1} parent=1 // pred_check
      _
    $region27: #{tpu_custom_call.1} parent=1 // pred_check_branch
      %78 = sbr.rel (0) target = $region29
    $region28: #{tpu_custom_call.1} parent=1 // pred_region
      %80 = vsyncadd [#allocation6], 0
      %s82 = sshll.u32 [#allocation9], 4
      %s83 = int_to_ptr.vmem [resolvable:$true] %s82
      %s84 = sshll.u32 %s2, 4
      %s85 = int_to_ptr.hbm [resolvable:$true] %s84
      %87 = dma.vmem_to_hbm [thread:$0]  %s83, 128, %s85, [#allocation6]
    $region29: #{tpu_custom_call.1} parent=1 // pred_fallthru
      _
    // Predicated region
    $region30: #{tpu_custom_call.1} parent=1 // pred_check
      _
    $region31: #{tpu_custom_call.1} parent=1 // pred_check_branch
      %89 = sbr.rel (0) target = $region33
    $region32: #{tpu_custom_call.1} parent=1 // pred_region
      %91 = vsyncadd [#allocation11], 0
      %s93 = sshll.u32 [#allocation10], 4
      %s94 = int_to_ptr.vmem [resolvable:$true] %s93
      %s95 = sshll.u32 %s3, 4
      %s96 = int_to_ptr.hbm [resolvable:$true] %s95
      %98 = dma.vmem_to_hbm [thread:$0]  %s94, 128, %s96, [#allocation11]
    $region33: #{tpu_custom_call.1} parent=1 // pred_fallthru
      _
    // Predicated region
    $region34: #{tpu_custom_call.1} parent=1 // pred_check
      _
    $region35: #{tpu_custom_call.1} parent=1 // pred_check_branch
      %100 = sbr.rel (0) target = $region37
    $region36: #{tpu_custom_call.1} parent=1 // pred_region
      %102 = dma.done [#allocation6], 128
    $region37: #{tpu_custom_call.1} parent=1 // pred_fallthru
      _
    // Predicated region
    $region38: #{tpu_custom_call.1} parent=1 // pred_check
      _
    $region39: #{tpu_custom_call.1} parent=1 // pred_check_branch
      %104 = sbr.rel (0) target = $region41
    $region40: #{tpu_custom_call.1} parent=1 // pred_region
      %106 = dma.done [#allocation11], 128
    $region41: #{tpu_custom_call.1} parent=1 // pred_fallthru
      _
    %107 = vsyncpa [#allocation5], 1
    %108 = vsyncpa [#allocation8], 1
    %109 = vsyncpa [#allocation6], 1
    %110 = vsyncpa [#allocation11], 1

</llo_original>
